<compile_context>
chip_gen: v7x
topology: tpu7x:2x2x1
jax: 0.10.0
libtpu: 0.0.40
codegen_flags: <defaults>
</compile_context>

<pallas_src>
import jax
import jax.numpy as jnp
from jax.experimental import pallas as pl
from jax.experimental.pallas import tpu as pltpu

HIDDEN_SIZE = 32
INPUT_SIZE = 3 * 10 * 10          # 300
IN_SIZE = INPUT_SIZE // 3         # 100
OUT_PAD = 384                     # 3 * 128, lane-dense output width
NEG_SLOPE = 0.01
DEFAULT_BLOCK_B = 512             # batch tile (multiple of 8)


def _round_up(n, m):
    return ((n + m - 1) // m) * m


def two_layer_nn_kernel(x_ref, w1_ref, b1_ref, w2_ref, b2_ref, o_ref):
    """Fused: (avg-folded) linear -> leaky-relu -> linear, one batch tile."""
    x = x_ref[...]                                                  # (TB, 300)

    # TODO(synk): dropout_1 / dropout_2 are identity here (inference mode);
    # training-mode dropout would need pltpu.prng_seed + stateful_bernoulli.

    # layer_1 with the channel-average folded into w1_eff (300 -> H), + bias
    z1 = jnp.dot(x, w1_ref[...], preferred_element_type=jnp.float32) \
         + b1_ref[...]                                              # (TB, H)
    a1 = jnp.where(z1 >= 0.0, z1, NEG_SLOPE * z1)                   # LeakyReLU

    # layer_2 (H -> 384 lane-dense padded output)
    z2 = jnp.dot(a1, w2_ref[...], preferred_element_type=jnp.float32) \
         + b2_ref[...]                                              # (TB, 384)

    o_ref[...] = z2.astype(o_ref.dtype)


def two_layer_nn_forward(x, w1, b1, w2, b2, *, block_b=DEFAULT_BLOCK_B):
    """x: (B, 300) float32 -> (B, 300) float32."""
    B = x.shape[0]
    H = w1.shape[1]

    # Fold average_of_three_entries into layer_1's weight: (300, H).
    w1_eff = jnp.concatenate([w1, w1, w1], axis=0) * (1.0 / 3.0)

    # Zero-pad layer_2 to a lane-dense 384-wide output.
    w2_pad = jnp.pad(w2, ((0, 0), (0, OUT_PAD - INPUT_SIZE)))
    b2_pad = jnp.pad(b2, ((0, 0), (0, OUT_PAD - INPUT_SIZE)))

    # Batch tiling: TB multiple of 8, pad B up to a multiple of TB.
    tb = min(block_b, _round_up(B, 8))
    b_pad = _round_up(B, tb)
    x_p = jnp.pad(x, ((0, b_pad - B), (0, 0))) if b_pad != B else x

    out = pl.pallas_call(
        two_layer_nn_kernel,
        out_shape=jax.ShapeDtypeStruct((b_pad, OUT_PAD), jnp.float32),
        grid_spec=pltpu.PrefetchScalarGridSpec(
            num_scalar_prefetch=0,
            grid=(b_pad // tb,),
            in_specs=[
                pl.BlockSpec((tb, INPUT_SIZE), lambda i: (i, 0)),   # x tile
                pl.BlockSpec((INPUT_SIZE, H), lambda i: (0, 0)),    # w1_eff
                pl.BlockSpec((1, H), lambda i: (0, 0)),             # b1
                pl.BlockSpec((H, OUT_PAD), lambda i: (0, 0)),       # w2 (padded)
                pl.BlockSpec((1, OUT_PAD), lambda i: (0, 0)),       # b2 (padded)
            ],
            out_specs=pl.BlockSpec((tb, OUT_PAD), lambda i: (i, 0)),
        ),
        compiler_params=pltpu.CompilerParams(
            dimension_semantics=("parallel",)),
    )(x_p, w1_eff, b1, w2_pad, b2_pad)

    return out[:B, :INPUT_SIZE]


def init_params(key, hidden_size=HIDDEN_SIZE):
    """Deterministic init mimicking torch.nn.Linear (U(-1/sqrt(fan_in), +))."""
    k1, k2, k3, k4 = jax.random.split(key, 4)
    bound1 = 1.0 / jnp.sqrt(IN_SIZE)
    bound2 = 1.0 / jnp.sqrt(hidden_size)
    w1 = jax.random.uniform(k1, (IN_SIZE, hidden_size), jnp.float32,
                            -bound1, bound1)
    b1 = jax.random.uniform(k2, (1, hidden_size), jnp.float32,
                            -bound1, bound1)
    w2 = jax.random.uniform(k3, (hidden_size, INPUT_SIZE), jnp.float32,
                            -bound2, bound2)
    b2 = jax.random.uniform(k4, (1, INPUT_SIZE), jnp.float32,
                            -bound2, bound2)
    return w1, b1, w2, b2


def reference_forward(x, w1, b1, w2, b2):
    """Pure-JAX reference matching the original PyTorch semantics."""
    xa = x.reshape(x.shape[0], 3, IN_SIZE).mean(axis=1)
    z1 = xa @ w1 + b1
    a1 = jnp.where(z1 >= 0.0, z1, NEG_SLOPE * z1)
    return a1 @ w2 + b2


if __name__ == "__main__":
    key = jax.random.PRNGKey(0)
    kx, kx2, kp = jax.random.split(key, 3)
    w1, b1, w2, b2 = init_params(kp, HIDDEN_SIZE)

    # Small primary check (batch=2).
    batch = 2
    x = jax.random.normal(kx, (batch, INPUT_SIZE), jnp.float32)
    out = jax.block_until_ready(two_layer_nn_forward(x, w1, b1, w2, b2))
    ref = reference_forward(x, w1, b1, w2, b2)
    assert out.shape == (batch, INPUT_SIZE)
    assert jnp.allclose(out, ref, atol=1e-4, rtol=1e-4), "mismatch (B=2)"

    # Secondary check exercising the batch grid + tail padding (B not a
    # multiple of the 512-row tile).
    batch2 = 520
    x2 = jax.random.normal(kx2, (batch2, INPUT_SIZE), jnp.float32)
    out2 = jax.block_until_ready(two_layer_nn_forward(x2, w1, b1, w2, b2))
    ref2 = reference_forward(x2, w1, b1, w2, b2)
    assert out2.shape == (batch2, INPUT_SIZE)
    assert jnp.allclose(out2, ref2, atol=1e-4, rtol=1e-4), "mismatch (B=520)"

    print("KERNEL_OK")
</pallas_src>

<mosaic_0001>
module attributes {stable_mosaic.version = 11 : i64} {
  func.func @two_layer_nn_kernel(%arg0: i32, %arg1: memref<8x300xf32, #tpu.memory_space<vmem>>, %arg2: memref<300x32xf32, #tpu.memory_space<vmem>>, %arg3: memref<1x32xf32, #tpu.memory_space<vmem>>, %arg4: memref<32x384xf32, #tpu.memory_space<vmem>>, %arg5: memref<1x384xf32, #tpu.memory_space<vmem>>, %arg6: memref<8x384xf32, #tpu.memory_space<vmem>>) attributes {dimension_semantics = [#tpu.dimension_semantics<parallel>], iteration_bounds = array<i64: 1>, scalar_prefetch = 0 : i64, scratch_operands = 0 : i64, tpu.core_type = #tpu.core_type<tc>, window_params = [{transform_indices = @transform_0, window_bounds = array<i64: 8, 300>}, {pipeline_mode = #tpu.pipeline_mode<synchronous>, transform_indices = @transform_1, window_bounds = array<i64: 300, 32>}, {pipeline_mode = #tpu.pipeline_mode<synchronous>, transform_indices = @transform_2, window_bounds = array<i64: 1, 32>}, {pipeline_mode = #tpu.pipeline_mode<synchronous>, transform_indices = @transform_3, window_bounds = array<i64: 32, 384>}, {pipeline_mode = #tpu.pipeline_mode<synchronous>, transform_indices = @transform_4, window_bounds = array<i64: 1, 384>}, {transform_indices = @transform_5, window_bounds = array<i64: 8, 384>}]} {
    %c0 = arith.constant 0 : index
    %c0_0 = arith.constant 0 : index
    %0 = vector.load %arg1[%c0, %c0_0] : memref<8x300xf32, #tpu.memory_space<vmem>>, vector<8x300xf32>
    %c0_1 = arith.constant 0 : index
    %c0_2 = arith.constant 0 : index
    %1 = vector.load %arg2[%c0_1, %c0_2] : memref<300x32xf32, #tpu.memory_space<vmem>>, vector<300x32xf32>
    %cst = arith.constant dense<0.000000e+00> : vector<8x32xf32>
    %2 = tpu.matmul %0, %1, %cst {dimension_numbers = #tpu.dot_dimension_numbers<[1], [0], [0], [1], [0, 0, 1, 1], [], []>} : vector<8x300xf32>, vector<300x32xf32>, vector<8x32xf32> -> vector<8x32xf32>
    %c0_3 = arith.constant 0 : index
    %c0_4 = arith.constant 0 : index
    %3 = vector.load %arg3[%c0_3, %c0_4] : memref<1x32xf32, #tpu.memory_space<vmem>>, vector<1x32xf32>
    %4 = vector.broadcast %3 : vector<1x32xf32> to vector<8x32xf32>
    %5 = arith.addf %2, %4 : vector<8x32xf32>
    %cst_5 = arith.constant 0.000000e+00 : f32
    %6 = vector.broadcast %cst_5 : f32 to vector<8x32xf32>
    %7 = arith.cmpf oge, %5, %6 : vector<8x32xf32>
    %cst_6 = arith.constant 0.00999999977 : f32
    %8 = vector.broadcast %cst_6 : f32 to vector<8x32xf32>
    %9 = arith.mulf %8, %5 : vector<8x32xf32>
    %10 = arith.select %7, %5, %9 : vector<8x32xi1>, vector<8x32xf32>
    %c0_7 = arith.constant 0 : index
    %c0_8 = arith.constant 0 : index
    %11 = vector.load %arg4[%c0_7, %c0_8] : memref<32x384xf32, #tpu.memory_space<vmem>>, vector<32x384xf32>
    %cst_9 = arith.constant dense<0.000000e+00> : vector<8x384xf32>
    %12 = tpu.matmul %10, %11, %cst_9 {dimension_numbers = #tpu.dot_dimension_numbers<[1], [0], [0], [1], [0, 0, 1, 1], [], []>} : vector<8x32xf32>, vector<32x384xf32>, vector<8x384xf32> -> vector<8x384xf32>
    %c0_10 = arith.constant 0 : index
    %c0_11 = arith.constant 0 : index
    %13 = vector.load %arg5[%c0_10, %c0_11] : memref<1x384xf32, #tpu.memory_space<vmem>>, vector<1x384xf32>
    %14 = vector.broadcast %13 : vector<1x384xf32> to vector<8x384xf32>
    %15 = arith.addf %12, %14 : vector<8x384xf32>
    %c0_12 = arith.constant 0 : index
    %c0_13 = arith.constant 0 : index
    %16 = vector.load %arg6[%c0_12, %c0_13] : memref<8x384xf32, #tpu.memory_space<vmem>>, vector<8x384xf32>
    tpu.vector_store %arg6[%c0_12, %c0_13], %15 {strides = array<i32>} : memref<8x384xf32, #tpu.memory_space<vmem>>, vector<8x384xf32>,
    return
  }
  func.func @transform_0(%arg0: i32) -> (i32, i32) {
    %c0_i32 = arith.constant 0 : i32
    %c0_i32_0 = arith.constant 0 : i32
    return %arg0, %c0_i32 : i32, i32
  }
  func.func @transform_1(%arg0: i32) -> (i32, i32) {
    %c0_i32 = arith.constant 0 : i32
    %c0_i32_0 = arith.constant 0 : i32
    %c0_i32_1 = arith.constant 0 : i32
    return %c0_i32, %c0_i32_0 : i32, i32
  }
  func.func @transform_2(%arg0: i32) -> (i32, i32) {
    %c0_i32 = arith.constant 0 : i32
    %c0_i32_0 = arith.constant 0 : i32
    %c0_i32_1 = arith.constant 0 : i32
    return %c0_i32, %c0_i32_0 : i32, i32
  }
  func.func @transform_3(%arg0: i32) -> (i32, i32) {
    %c0_i32 = arith.constant 0 : i32
    %c0_i32_0 = arith.constant 0 : i32
    %c0_i32_1 = arith.constant 0 : i32
    return %c0_i32, %c0_i32_0 : i32, i32
  }
  func.func @transform_4(%arg0: i32) -> (i32, i32) {
    %c0_i32 = arith.constant 0 : i32
    %c0_i32_0 = arith.constant 0 : i32
    %c0_i32_1 = arith.constant 0 : i32
    return %c0_i32, %c0_i32_0 : i32, i32
  }
  func.func @transform_5(%arg0: i32) -> (i32, i32) {
    %c0_i32 = arith.constant 0 : i32
    %c0_i32_0 = arith.constant 0 : i32
    return %arg0, %c0_i32 : i32, i32
  }
}

</mosaic_0001>

<llo_original>
// kernel: tpu_custom_call.1
$region0: #{tpu_custom_call.1}
  #allocation0 [shape = 'u32[]', space=smem, size = 0x4, offset = 0x4, fixed_abs, tag = 'smem constant byte address 0x4 - core index']
  #allocation1 [shape = 'u32[144,128]{1,0:T(1,128)}', space=vmem, size = 0x12000, scoped, tag = 'internal scratch']
  %s0 = inlined_call_operand.vmem [shape: f32[8,300], index: 0, kind: input, shape index: {}]
  %s1 = inlined_call_operand.vmem [shape: f32[300,32], index: 1, kind: input, shape index: {}]
  %s2 = inlined_call_operand.vmem [shape: f32[1,32], index: 2, kind: input, shape index: {}]
  %s3 = inlined_call_operand.vmem [shape: f32[32,384], index: 3, kind: input, shape index: {}]
  %s4 = inlined_call_operand.vmem [shape: f32[1,384], index: 4, kind: input, shape index: {}]
  %s5 = inlined_call_operand.hbm [shape: f32[8,384], index: 5, kind: output, shape index: {}]
  %s6 = sld [smem:[#allocation0]]
  $region30: #{tpu_custom_call.1} parent=0
    _
  %s8 = ssub.s32 1, %s6
  %s9 = scalar_select 0, %s8, %s6
  $region1: #{tpu_custom_call.1} parent=0
    #allocation2 [shape = 'u8[12288]{0}', space=vmem, size = 0x3000, scoped, tag = 'output window, operand 0, single buffered']
    #allocation3 [shape = 's32[1]{0}', space=sflag, size = 0x4, scoped, tag = 'scoped memory for tpu_custom_call.1']
    %10 = vsyncpa [#allocation3], 0
    // Predicated region
    $region2: #{tpu_custom_call.1} parent=1 // pred_check
      _
    $region3: #{tpu_custom_call.1} parent=1 // pred_check_branch
      %12 = sbr.rel (0) target = $region5
    $region4: #{tpu_custom_call.1} parent=1 // pred_region
      _
    $region5: #{tpu_custom_call.1} parent=1 // pred_fallthru
      _
    // Predicated region
    $region6: #{tpu_custom_call.1} parent=1 // pred_check
      _
    $region7: #{tpu_custom_call.1} parent=1 // pred_check_branch
      %14 = sbr.rel (0) target = $region9
    $region8: #{tpu_custom_call.1} parent=1 // pred_region
      _
    $region9: #{tpu_custom_call.1} parent=1 // pred_fallthru
      _
    // Predicated region
    $region10: #{tpu_custom_call.1} parent=1 // pred_check
      _
    $region11: #{tpu_custom_call.1} parent=1 // pred_check_branch
      %16 = sbr.rel (0) target = $region13
    $region12: #{tpu_custom_call.1} parent=1 // pred_region
      _
    $region13: #{tpu_custom_call.1} parent=1 // pred_fallthru
      _
    // Predicated region
    $region14: #{tpu_custom_call.1} parent=1 // pred_check
      _
    $region15: #{tpu_custom_call.1} parent=1 // pred_check_branch
      %18 = sbr.rel (0) target = $region17
    $region16: #{tpu_custom_call.1} parent=1 // pred_region
      _
    $region17: #{tpu_custom_call.1} parent=1 // pred_fallthru
      _
    // Predicated region
    $region18: #{tpu_custom_call.1} parent=1 // pred_check
      _
    $region19: #{tpu_custom_call.1} parent=1 // pred_check_branch
      %20 = sbr.rel (0) target = $region21
    $region20: #{tpu_custom_call.1} parent=1 // pred_region
      _
    $region21: #{tpu_custom_call.1} parent=1 // pred_fallthru
      _
    %v21 = vld [vmem:[%s0] sm:$0xff]
    %v22 = vld [vmem:[%s0 + $0x8] sm:$0xff]
    %v23 = vld [vmem:[%s0 + $0x10] sm:$0xff]
    %v24 = vld [vmem:[%s1] sm:$0xff]
    %v25 = vld [vmem:[%s1 + $0x8] sm:$0xff]
    %v26 = vld [vmem:[%s1 + $0x10] sm:$0xff]
    %v27 = vld [vmem:[%s1 + $0x18] sm:$0xff]
    %v28 = vld [vmem:[%s1 + $0x20] sm:$0xff]
    %v29 = vld [vmem:[%s1 + $0x28] sm:$0xff]
    %v30 = vld [vmem:[%s1 + $0x30] sm:$0xff]
    %v31 = vld [vmem:[%s1 + $0x38] sm:$0xff]
    %v32 = vld [vmem:[%s1 + $0x40] sm:$0xff]
    %v33 = vld [vmem:[%s1 + $0x48] sm:$0xff]
    %v34 = vld [vmem:[%s1 + $0x50] sm:$0xff]
    %v35 = vld [vmem:[%s1 + $0x58] sm:$0xff]
    %v36 = vld [vmem:[%s1 + $0x60] sm:$0xff]
    %v37 = vld [vmem:[%s1 + $0x68] sm:$0xff]
    %v38 = vld [vmem:[%s1 + $0x70] sm:$0xff]
    %v39 = vld [vmem:[%s1 + $0x78] sm:$0xff]
    %v40 = vld [vmem:[%s1 + $0x80] sm:$0xff]
    %v41 = vld [vmem:[%s1 + $0x88] sm:$0xff]
    %v42 = vld [vmem:[%s1 + $0x90] sm:$0xff]
    %v43 = vld [vmem:[%s1 + $0x98] sm:$0xff]
    %v44 = vld [vmem:[%s1 + $0xa0] sm:$0xff]
    %v45 = vld [vmem:[%s1 + $0xa8] sm:$0xff]
    %v46 = vld [vmem:[%s1 + $0xb0] sm:$0xff]
    %v47 = vld [vmem:[%s1 + $0xb8] sm:$0xff]
    %v48 = vld [vmem:[%s1 + $0xc0] sm:$0xff]
    %v49 = vld [vmem:[%s1 + $0xc8] sm:$0xff]
    %v50 = vld [vmem:[%s1 + $0xd0] sm:$0xff]
    %v51 = vld [vmem:[%s1 + $0xd8] sm:$0xff]
    %v52 = vld [vmem:[%s1 + $0xe0] sm:$0xff]
    %v53 = vld [vmem:[%s1 + $0xe8] sm:$0xff]
    %v54 = vld [vmem:[%s1 + $0xf0] sm:$0xff]
    %v55 = vld [vmem:[%s1 + $0xf8] sm:$0xff]
    %v56 = vld [vmem:[%s1 + $0x100] sm:$0xff]
    %v57 = vld [vmem:[%s1 + $0x108] sm:$0xff]
    %v58 = vld [vmem:[%s1 + $0x110] sm:$0xff]
    %v59 = vld [vmem:[%s1 + $0x118] sm:$0xff]
    %v60 = vld [vmem:[%s1 + $0x120] sm:$0xff]
    %v61 = vld [vmem:[%s1 + $0x128] sm:$0xf]
    %v62 = vld [vmem:[%s2] sm:$0x1]
    %v64 = vlaneseq
    %v65 = vshrl.u32 %v64, 7
    %v66 = vsub.s32 0, %v65
    %v67 = vrot.slane %v62, %v66
    %vm69 = vcmask 359424
    %v71 = vsel %vm69, %v23, 0
    %vm73 = vcmask 1043456
    %v75 = vsel %vm73, %v61, 0
    %77 = vmatprep.subr.mxu0 0.0
    %78 = vmatpush1.msra.mxu0 %v24
    %79 = vmatprep.subr.mxu0 0.0
    %80 = vmatpush1.msra.mxu0 %v25
    %81 = vmatprep.subr.mxu0 0.0
    %82 = vmatpush1.msra.mxu0 %v26
    %83 = vmatprep.subr.mxu0 0.0
    %84 = vmatpush1.msra.mxu0 %v27
    %85 = vmatprep.subr.mxu0 0.0
    %86 = vmatpush1.msra.mxu0 %v28
    %87 = vmatprep.subr.mxu0 0.0
    %88 = vmatpush1.msra.mxu0 %v29
    %89 = vmatprep.subr.mxu0 0.0
    %90 = vmatpush1.msra.mxu0 %v30
    %91 = vmatprep.subr.mxu0 0.0
    %92 = vmatpush1.msra.mxu0 %v31
    %93 = vmatprep.subr.mxu0 0.0
    %94 = vmatpush1.msra.mxu0 %v32
    %95 = vmatprep.subr.mxu0 0.0
    %96 = vmatpush1.msra.mxu0 %v33
    %97 = vmatprep.subr.mxu0 0.0
    %98 = vmatpush1.msra.mxu0 %v34
    %99 = vmatprep.subr.mxu0 0.0
    %100 = vmatpush1.msra.mxu0 %v35
    %101 = vmatprep.subr.mxu0 0.0
    %102 = vmatpush1.msra.mxu0 %v36
    %103 = vmatprep.subr.mxu0 0.0
    %104 = vmatpush1.msra.mxu0 %v37
    %105 = vmatprep.subr.mxu0 0.0
    %106 = vmatpush1.msra.mxu0 %v38
    %107 = vmatprep.subr.mxu0 0.0
    %108 = vmatpush1.msra.mxu0 %v39
    %109 = vmatprep.subr.mxu0 0.0
    %110 = vmatpush1.msra.mxu0 %v40
    %111 = vmatprep.subr.mxu0 0.0
    %112 = vmatpush1.msra.mxu0 %v41
    %113 = vmatprep.subr.mxu0 0.0
    %114 = vmatpush1.msra.mxu0 %v42
    %115 = vmatprep.subr.mxu0 0.0
    %116 = vmatpush1.msra.mxu0 %v43
    %117 = vmatprep.subr.mxu0 0.0
    %118 = vmatpush1.msra.mxu0 %v44
    %119 = vmatprep.subr.mxu0 0.0
    %120 = vmatpush1.msra.mxu0 %v45
    %121 = vmatprep.subr.mxu0 0.0
    %122 = vmatpush1.msra.mxu0 %v46
    %123 = vmatprep.subr.mxu0 0.0
    %124 = vmatpush1.msra.mxu0 %v47
    %125 = vmatprep.subr.mxu0 0.0
    %126 = vmatpush1.msra.mxu0 %v48
    %127 = vmatprep.subr.mxu0 0.0
    %128 = vmatpush1.msra.mxu0 %v49
    %129 = vmatprep.subr.mxu0 0.0
    %130 = vmatpush1.msra.mxu0 %v50
    %131 = vmatprep.subr.mxu0 0.0
    %132 = vmatpush1.msra.mxu0 %v51
    %133 = vmatprep.subr.mxu0 0.0
    %134 = vmatpush1.msra.mxu0 %v52
    %135 = vmatprep.subr.mxu0 0.0
    %136 = vmatpush1.msra.mxu0 %v53
    %137 = vmatprep.subr.mxu0 0.0
    %138 = vmatpush1.msra.mxu0 %v54
    %139 = vmatprep.subr.mxu0 0.0
    %140 = vmatpush1.msra.mxu0 %v55
    %141 = vmatprep.mubr.f32.mxu0 %v22
    %142 = vmatmul.mubr.f32.gmra.mrb[0].mxu0 %v21
    %v143 = vpop.f32.mrb[0].mxu0
    %v144 = vadd.f32 %v67, %v143
    %v145 = vpop.f32.mrb[0].mxu0
    %146 = vdwg.mxu0
    %147 = vmatprep.subr.mxu0 0.0
    %148 = vmatpush1.msra.mxu0 %v56
    %149 = vmatprep.subr.mxu0 0.0
    %150 = vmatpush1.msra.mxu0 %v57
    %151 = vmatprep.subr.mxu0 0.0
    %152 = vmatpush1.msra.mxu0 %v58
    %153 = vmatprep.subr.mxu0 0.0
    %154 = vmatpush1.msra.mxu0 %v59
    %155 = vmatprep.subr.mxu0 0.0
    %156 = vmatpush1.msra.mxu0 %v60
    %157 = vmatprep.subr.mxu0 0.0
    %158 = vmatpush1.msra.mxu0 %v75
    %159 = vmatprep.subr.mxu0 0.0
    %160 = vmatpush1.msra.mxu0 0.0
    %161 = vmatprep.subr.mxu0 0.0
    %162 = vmatpush1.msra.mxu0 0.0
    %163 = vmatprep.subr.mxu0 0.0
    %164 = vmatpush1.msra.mxu0 0.0
    %165 = vmatprep.subr.mxu0 0.0
    %166 = vmatpush1.msra.mxu0 0.0
    %167 = vmatprep.subr.mxu0 0.0
    %168 = vmatpush1.msra.mxu0 0.0
    %169 = vmatprep.subr.mxu0 0.0
    %170 = vmatpush1.msra.mxu0 0.0
    %171 = vmatprep.subr.mxu0 0.0
    %172 = vmatpush1.msra.mxu0 0.0
    %173 = vmatprep.subr.mxu0 0.0
    %174 = vmatpush1.msra.mxu0 0.0
    %175 = vmatprep.subr.mxu0 0.0
    %176 = vmatpush1.msra.mxu0 0.0
    %177 = vmatprep.subr.mxu0 0.0
    %178 = vmatpush1.msra.mxu0 0.0
    %179 = vmatprep.subr.mxu0 0.0
    %180 = vmatpush1.msra.mxu0 0.0
    %181 = vmatprep.subr.mxu0 0.0
    %182 = vmatpush1.msra.mxu0 0.0
    %183 = vmatprep.subr.mxu0 0.0
    %184 = vmatpush1.msra.mxu0 0.0
    %185 = vmatprep.subr.mxu0 0.0
    %186 = vmatpush1.msra.mxu0 0.0
    %187 = vmatprep.subr.mxu0 0.0
    %188 = vmatpush1.msra.mxu0 0.0
    %189 = vmatprep.subr.mxu0 0.0
    %190 = vmatpush1.msra.mxu0 0.0
    %191 = vmatprep.subr.mxu0 0.0
    %192 = vmatpush1.msra.mxu0 0.0
    %193 = vmatprep.subr.mxu0 0.0
    %194 = vmatpush1.msra.mxu0 0.0
    %195 = vmatprep.subr.mxu0 0.0
    %196 = vmatpush1.msra.mxu0 0.0
    %197 = vmatprep.subr.mxu0 0.0
    %198 = vmatpush1.msra.mxu0 0.0
    %199 = vmatprep.subr.mxu0 0.0
    %200 = vmatpush1.msra.mxu0 0.0
    %201 = vmatprep.subr.mxu0 0.0
    %202 = vmatpush1.msra.mxu0 0.0
    %203 = vmatprep.subr.mxu0 0.0
    %204 = vmatpush1.msra.mxu0 0.0
    %205 = vmatprep.subr.mxu0 0.0
    %206 = vmatpush1.msra.mxu0 0.0
    %207 = vmatprep.subr.mxu0 0.0
    %208 = vmatpush1.msra.mxu0 0.0
    %209 = vmatprep.subr.mxu0 0.0
    %210 = vmatpush1.msra.mxu0 0.0
    %211 = vmatprep.mubr.f32.mxu0 0.0
    %212 = vmatmul.mubr.f32.gmra.mrb[0].mxu0 %v71
    %v213 = vpop.f32.mrb[0].mxu0
    %v214 = vadd.f32 %v144, %v213
    %v215 = vpop.f32.mrb[0].mxu0
    %216 = vdwg.mxu0
    %vm217 = vcmp.ge.f32.partialorder %v214, 0.0
    %v218 = vmul.f32 %v214, 0.01
    %v219 = vsel %vm217, %v214, %v218
    %v220 = vld [vmem:[%s3] sm:$0xff]
    %v221 = vld [vmem:[%s3 + $0x8] sm:$0xff]
    %v222 = vld [vmem:[%s3 + $0x10] sm:$0xff]
    %v223 = vld [vmem:[%s3 + $0x18] sm:$0xff]
    %v224 = vld [vmem:[%s3 + $0x20] sm:$0xff]
    %v225 = vld [vmem:[%s3 + $0x28] sm:$0xff]
    %v226 = vld [vmem:[%s3 + $0x30] sm:$0xff]
    %v227 = vld [vmem:[%s3 + $0x38] sm:$0xff]
    %v228 = vld [vmem:[%s3 + $0x40] sm:$0xff]
    %v229 = vld [vmem:[%s3 + $0x48] sm:$0xff]
    %v230 = vld [vmem:[%s3 + $0x50] sm:$0xff]
    %v231 = vld [vmem:[%s3 + $0x58] sm:$0xff]
    %v232 = vld [vmem:[%s4] sm:$0x7]
    %v234 = vlaneseq
    %v235 = vshrl.u32 %v234, 7
    %v236 = vsub.s32 0, %v235
    %v237 = vrot.slane %v232, %v236
    %v238 = vlaneseq
    %v239 = vshrl.u32 %v238, 7
    %v240 = vsub.s32 1, %v239
    %v241 = vrot.slane %v232, %v240
    %v242 = vlaneseq
    %v243 = vshrl.u32 %v242, 7
    %v244 = vsub.s32 2, %v243
    %v245 = vrot.slane %v232, %v244
    %vm249 = vcmask 261120
    %v251 = vsel %vm249, %v219, 0
    %253 = vmatprep.subr.mxu0 %v221
    %254 = vmatpush1.msra.mxu0 %v220
    %255 = vmatprep.subr.mxu0 %v224
    %256 = vmatpush1.msra.mxu0 %v223
    %257 = vmatprep.subr.mxu0 %v227
    %258 = vmatpush1.msra.mxu0 %v226
    %259 = vmatprep.subr.mxu0 %v230
    %260 = vmatpush1.msra.mxu0 %v229
    %261 = vmatprep.subr.mxu0 0.0
    %262 = vmatpush1.msra.mxu0 0.0
    %263 = vmatprep.subr.mxu0 0.0
    %264 = vmatpush1.msra.mxu0 0.0
    %265 = vmatprep.subr.mxu0 0.0
    %266 = vmatpush1.msra.mxu0 0.0
    %267 = vmatprep.subr.mxu0 0.0
    %268 = vmatpush1.msra.mxu0 0.0
    %269 = vmatprep.subr.mxu0 0.0
    %270 = vmatpush1.msra.mxu0 0.0
    %271 = vmatprep.subr.mxu0 0.0
    %272 = vmatpush1.msra.mxu0 0.0
    %273 = vmatprep.subr.mxu0 0.0
    %274 = vmatpush1.msra.mxu0 0.0
    %275 = vmatprep.subr.mxu0 0.0
    %276 = vmatpush1.msra.mxu0 0.0
    %277 = vmatprep.subr.mxu0 0.0
    %278 = vmatpush1.msra.mxu0 0.0
    %279 = vmatprep.subr.mxu0 0.0
    %280 = vmatpush1.msra.mxu0 0.0
    %281 = vmatprep.subr.mxu0 0.0
    %282 = vmatpush1.msra.mxu0 0.0
    %283 = vmatprep.subr.mxu0 0.0
    %284 = vmatpush1.msra.mxu0 0.0
    %285 = vmatprep.subr.mxu0 0.0
    %286 = vmatpush1.msra.mxu0 0.0
    %287 = vmatprep.subr.mxu0 0.0
    %288 = vmatpush1.msra.mxu0 0.0
    %289 = vmatprep.subr.mxu0 0.0
    %290 = vmatpush1.msra.mxu0 0.0
    %291 = vmatprep.subr.mxu0 0.0
    %292 = vmatpush1.msra.mxu0 0.0
    %293 = vmatprep.subr.mxu0 0.0
    %294 = vmatpush1.msra.mxu0 0.0
    %295 = vmatprep.subr.mxu0 0.0
    %296 = vmatpush1.msra.mxu0 0.0
    %297 = vmatprep.subr.mxu0 0.0
    %298 = vmatpush1.msra.mxu0 0.0
    %299 = vmatprep.subr.mxu0 0.0
    %300 = vmatpush1.msra.mxu0 0.0
    %301 = vmatprep.subr.mxu0 0.0
    %302 = vmatpush1.msra.mxu0 0.0
    %303 = vmatprep.subr.mxu0 0.0
    %304 = vmatpush1.msra.mxu0 0.0
    %305 = vmatprep.subr.mxu0 0.0
    %306 = vmatpush1.msra.mxu0 0.0
    %307 = vmatprep.subr.mxu0 0.0
    %308 = vmatpush1.msra.mxu0 0.0
    %309 = vmatprep.subr.mxu0 0.0
    %310 = vmatpush1.msra.mxu0 0.0
    %311 = vmatprep.subr.mxu0 0.0
    %312 = vmatpush1.msra.mxu0 0.0
    %313 = vmatprep.subr.mxu0 0.0
    %314 = vmatpush1.msra.mxu0 0.0
    %315 = vmatprep.subr.mxu0 0.0
    %316 = vmatpush1.msra.mxu0 0.0
    %317 = vmatprep.mubr.f32.mxu0 0.0
    %318 = vmatmul.mubr.f32.gmra.mrb[0].mxu0 %v251
    %v319 = vpop.f32.mrb[0].mxu0
    %v320 = vadd.f32 %v237, %v319
    %v321 = vpop.f32.mrb[0].mxu0
    %v322 = vadd.f32 %v241, %v321
    %323 = vdwg.mxu0
    %324 = vmatprep.subr.mxu0 0.0
    %325 = vmatpush1.msra.mxu0 %v222
    %326 = vmatprep.subr.mxu0 0.0
    %327 = vmatpush1.msra.mxu0 %v225
    %328 = vmatprep.subr.mxu0 0.0
    %329 = vmatpush1.msra.mxu0 %v228
    %330 = vmatprep.subr.mxu0 0.0
    %331 = vmatpush1.msra.mxu0 %v231
    %332 = vmatprep.subr.mxu0 0.0
    %333 = vmatpush1.msra.mxu0 0.0
    %334 = vmatprep.subr.mxu0 0.0
    %335 = vmatpush1.msra.mxu0 0.0
    %336 = vmatprep.subr.mxu0 0.0
    %337 = vmatpush1.msra.mxu0 0.0
    %338 = vmatprep.subr.mxu0 0.0
    %339 = vmatpush1.msra.mxu0 0.0
    %340 = vmatprep.subr.mxu0 0.0
    %341 = vmatpush1.msra.mxu0 0.0
    %342 = vmatprep.subr.mxu0 0.0
    %343 = vmatpush1.msra.mxu0 0.0
    %344 = vmatprep.subr.mxu0 0.0
    %345 = vmatpush1.msra.mxu0 0.0
    %346 = vmatprep.subr.mxu0 0.0
    %347 = vmatpush1.msra.mxu0 0.0
    %348 = vmatprep.subr.mxu0 0.0
    %349 = vmatpush1.msra.mxu0 0.0
    %350 = vmatprep.subr.mxu0 0.0
    %351 = vmatpush1.msra.mxu0 0.0
    %352 = vmatprep.subr.mxu0 0.0
    %353 = vmatpush1.msra.mxu0 0.0
    %354 = vmatprep.subr.mxu0 0.0
    %355 = vmatpush1.msra.mxu0 0.0
    %356 = vmatprep.subr.mxu0 0.0
    %357 = vmatpush1.msra.mxu0 0.0
    %358 = vmatprep.subr.mxu0 0.0
    %359 = vmatpush1.msra.mxu0 0.0
    %360 = vmatprep.subr.mxu0 0.0
    %361 = vmatpush1.msra.mxu0 0.0
    %362 = vmatprep.subr.mxu0 0.0
    %363 = vmatpush1.msra.mxu0 0.0
    %364 = vmatprep.subr.mxu0 0.0
    %365 = vmatpush1.msra.mxu0 0.0
    %366 = vmatprep.subr.mxu0 0.0
    %367 = vmatpush1.msra.mxu0 0.0
    %368 = vmatprep.subr.mxu0 0.0
    %369 = vmatpush1.msra.mxu0 0.0
    %370 = vmatprep.subr.mxu0 0.0
    %371 = vmatpush1.msra.mxu0 0.0
    %372 = vmatprep.subr.mxu0 0.0
    %373 = vmatpush1.msra.mxu0 0.0
    %374 = vmatprep.subr.mxu0 0.0
    %375 = vmatpush1.msra.mxu0 0.0
    %376 = vmatprep.subr.mxu0 0.0
    %377 = vmatpush1.msra.mxu0 0.0
    %378 = vmatprep.subr.mxu0 0.0
    %379 = vmatpush1.msra.mxu0 0.0
    %380 = vmatprep.subr.mxu0 0.0
    %381 = vmatpush1.msra.mxu0 0.0
    %382 = vmatprep.subr.mxu0 0.0
    %383 = vmatpush1.msra.mxu0 0.0
    %384 = vmatprep.subr.mxu0 0.0
    %385 = vmatpush1.msra.mxu0 0.0
    %386 = vmatprep.subr.mxu0 0.0
    %387 = vmatpush1.msra.mxu0 0.0
    %388 = vmatprep.mubr.f32.mxu0 0.0
    %389 = vmatmul.mubr.f32.gmra.mrb[0].mxu0 %v251
    %v390 = vpop.f32.mrb[0].mxu0
    %v391 = vadd.f32 %v245, %v390
    %v392 = vpop.f32.mrb[0].mxu0
    %393 = vdwg.mxu0
    %394 = vst [vmem:[#allocation2] sm:$0xff] %v320
    %395 = vst [vmem:[#allocation2 + $0x8] sm:$0xff] %v322
    %396 = vst [vmem:[#allocation2 + $0x10] sm:$0xff] %v391
    // Predicated region
    $region22: #{tpu_custom_call.1} parent=1 // pred_check
      _
    $region23: #{tpu_custom_call.1} parent=1 // pred_check_branch
      %398 = sbr.rel (0) target = $region25
    $region24: #{tpu_custom_call.1} parent=1 // pred_region
      %s400 = ssub.s32 384, 384
      %401 = vsyncadd [#allocation3], %s400
      %s403 = sshll.u32 [#allocation2], 4
      %s404 = int_to_ptr.vmem [resolvable:$true] %s403
      %406 = dma.vmem_to_hbm [thread:$0]  %s404, 384, %s5, [#allocation3]
    $region25: #{tpu_custom_call.1} parent=1 // pred_fallthru
      _
    // Predicated region
    $region26: #{tpu_custom_call.1} parent=1 // pred_check
      _
    $region27: #{tpu_custom_call.1} parent=1 // pred_check_branch
      %408 = sbr.rel (0) target = $region29
    $region28: #{tpu_custom_call.1} parent=1 // pred_region
      %409 = dma.done [#allocation3], 384
    $region29: #{tpu_custom_call.1} parent=1 // pred_fallthru
      _
    %410 = vsyncpa [#allocation3], 1

</llo_original>
